<compile_context>
chip_gen: v7x
topology: tpu7x:2x2x1
jax: 0.10.0
libtpu: 0.0.40
codegen_flags: <defaults>
</compile_context>

<pallas_src>
import functools

import jax
import jax.numpy as jnp
from jax.experimental import pallas as pl
from jax.experimental.pallas import tpu as pltpu

SUBLANE = 8
MODE_PAD = 8          # fc3 output columns padded to the sublane granule
NEG_LARGE = -1e30     # padded-lane logit bias (exp -> 0 after max-subtract)


def _round_up(n, m):
    return ((n + m - 1) // m) * m


def mode_selector_kernel(x_ref, w1_ref, b1_ref, w2_ref, b2_ref, w3_ref, b3_ref,
                         out_ref):
    # In-kernel cast to the MXU operand dtype (no-op for f32, free VPU work for
    # bf16); accumulation and all elementwise math stay f32.
    x = x_ref[...].astype(w1_ref.dtype)

    # fc1 + relu  (dropout = identity in eval mode)
    h1 = jnp.dot(x, w1_ref[...], preferred_element_type=jnp.float32) + b1_ref[...]
    h1 = jnp.maximum(h1, 0.0)

    # fc2 + relu
    h2 = jnp.dot(h1.astype(w2_ref.dtype), w2_ref[...],
                 preferred_element_type=jnp.float32) + b2_ref[...]
    h2 = jnp.maximum(h2, 0.0)

    # fc3: padded columns have zero weights and a -1e30 bias, so the softmax
    # mask is already baked in -- no iota / where needed.
    logits = jnp.dot(h2.astype(w3_ref.dtype), w3_ref[...],
                     preferred_element_type=jnp.float32) + b3_ref[...]

    m = jnp.max(logits, axis=-1, keepdims=True)
    e = jnp.exp(logits - m)
    denom = jnp.sum(e, axis=-1, keepdims=True)
    # exact reciprocal keeps the 1e-5 tolerance (softmax work is negligible here)
    probs = e * pl.reciprocal(denom, approx=False)

    out_ref[...] = probs.astype(out_ref.dtype)


def prepare_params(params, *, mxu_dtype=jnp.float32):
    """One-time parameter prep: pad fc3 to MODE_PAD columns, fold the softmax
    mask into the padded bias lanes, optionally cast *weights only* to the MXU
    operand dtype (biases stay f32).  Returns (prepared_params, num_modes)."""
    w1, b1, w2, b2, w3, b3 = params
    hidden, num_modes = w3.shape
    w3p = jnp.zeros((hidden, MODE_PAD), jnp.float32).at[:, :num_modes].set(w3)
    b3p = jnp.full((1, MODE_PAD), NEG_LARGE, jnp.float32).at[:, :num_modes].set(
        b3.reshape(1, num_modes))
    if mxu_dtype != jnp.float32:
        w1 = w1.astype(mxu_dtype)
        w2 = w2.astype(mxu_dtype)
        w3p = w3p.astype(mxu_dtype)
    return (w1, b1, w2, b2, w3p, b3p), num_modes


@functools.partial(jax.jit, static_argnames=("num_modes", "tile_b"))
def mode_selector_forward(x, prepared, *, num_modes, tile_b=2048):
    """x: (B, input_dim) float32 -> (B, num_modes) float32 probabilities."""
    w1, b1, w2, b2, w3p, b3p = prepared
    B, input_dim = x.shape
    hidden = w1.shape[1]
    mode_pad = w3p.shape[1]

    # Batch tile: TB rows per grid step (8-sublane granule); weights stay
    # VMEM-resident across the grid.  When more than one step is needed, round
    # the step count up to an even number so v7x's two TensorCores balance.
    TB = min(_round_up(B, SUBLANE), int(tile_b))
    TB = _round_up(TB, SUBLANE)
    steps = (B + TB - 1) // TB
    if steps > 1 and steps % 2 == 1:
        steps += 1
    B_pad = steps * TB
    if B_pad != B:
        x = jnp.pad(x, ((0, B_pad - B), (0, 0)))

    out = pl.pallas_call(
        mode_selector_kernel,
        out_shape=jax.ShapeDtypeStruct((B_pad, mode_pad), jnp.float32),
        grid=(steps,),
        in_specs=[
            pl.BlockSpec((TB, input_dim), lambda i: (i, 0)),       # x: tiled over batch
            pl.BlockSpec((input_dim, hidden), lambda i: (0, 0)),   # weights/biases:
            pl.BlockSpec((1, hidden), lambda i: (0, 0)),           #   VMEM-resident
            pl.BlockSpec((hidden, hidden), lambda i: (0, 0)),      #   across the grid
            pl.BlockSpec((1, hidden), lambda i: (0, 0)),
            pl.BlockSpec((hidden, mode_pad), lambda i: (0, 0)),
            pl.BlockSpec((1, mode_pad), lambda i: (0, 0)),
        ],
        out_specs=pl.BlockSpec((TB, mode_pad), lambda i: (i, 0)),
        compiler_params=pltpu.CompilerParams(
            dimension_semantics=("parallel",)),
    )(x, w1, b1, w2, b2, w3p, b3p)

    return out[:B, :num_modes]


def init_params(key, input_dim=10, hidden_dim=32, num_modes=5):
    """Deterministic init mimicking nn.Linear default (U[-1/sqrt(fan_in), 1/sqrt(fan_in)])."""
    ks = jax.random.split(key, 6)

    def linear(kw, kb, fan_in, fan_out):
        bound = 1.0 / jnp.sqrt(fan_in)
        # stored as (in, out) so kernel computes x @ W
        w = jax.random.uniform(kw, (fan_in, fan_out), jnp.float32, -bound, bound)
        b = jax.random.uniform(kb, (1, fan_out), jnp.float32, -bound, bound)
        return w, b

    w1, b1 = linear(ks[0], ks[1], input_dim, hidden_dim)
    w2, b2 = linear(ks[2], ks[3], hidden_dim, hidden_dim)
    w3, b3 = linear(ks[4], ks[5], hidden_dim, num_modes)
    return (w1, b1, w2, b2, w3, b3)


def reference_forward(x, params):
    """Pure-JAX reference of the PyTorch forward (eval mode)."""
    w1, b1, w2, b2, w3, b3 = params
    h = jnp.maximum(x @ w1 + b1, 0.0)
    h = jnp.maximum(h @ w2 + b2, 0.0)
    logits = h @ w3 + b3
    return jax.nn.softmax(logits, axis=-1)


if __name__ == "__main__":
    key = jax.random.PRNGKey(0)
    k_params, k_x1, k_x2 = jax.random.split(key, 3)

    input_dim, hidden_dim, num_modes, batch = 10, 32, 5, 8
    params = init_params(k_params, input_dim, hidden_dim, num_modes)
    prepared, nm = prepare_params(params)          # one-time padding / mask fold

    # Small batch: single grid step, whole problem resident in VMEM.
    x = jax.random.normal(k_x1, (batch, input_dim), jnp.float32)
    out = jax.block_until_ready(mode_selector_forward(x, prepared, num_modes=nm))
    ref = reference_forward(x, params)
    assert out.shape == (batch, num_modes)
    assert jnp.allclose(jnp.sum(out, axis=-1), 1.0, atol=1e-5)
    assert jnp.allclose(out, ref, atol=1e-5, rtol=1e-5)

    # Larger, non-aligned batch: exercises batch grid (even step count) + row padding.
    big_batch = 200
    xb = jax.random.normal(k_x2, (big_batch, input_dim), jnp.float32)
    outb = jax.block_until_ready(
        mode_selector_forward(xb, prepared, num_modes=nm, tile_b=64))
    refb = reference_forward(xb, params)
    assert outb.shape == (big_batch, num_modes)
    assert jnp.allclose(jnp.sum(outb, axis=-1), 1.0, atol=1e-5)
    assert jnp.allclose(outb, refb, atol=1e-5, rtol=1e-5)

    print("KERNEL_OK")
</pallas_src>

<mosaic_0001>
module attributes {stable_mosaic.version = 11 : i64} {
  func.func @mode_selector_kernel(%arg0: i32, %arg1: memref<8x10xf32, #tpu.memory_space<vmem>>, %arg2: memref<10x32xf32, #tpu.memory_space<vmem>>, %arg3: memref<1x32xf32, #tpu.memory_space<vmem>>, %arg4: memref<32x32xf32, #tpu.memory_space<vmem>>, %arg5: memref<1x32xf32, #tpu.memory_space<vmem>>, %arg6: memref<32x8xf32, #tpu.memory_space<vmem>>, %arg7: memref<1x8xf32, #tpu.memory_space<vmem>>, %arg8: memref<8x8xf32, #tpu.memory_space<vmem>>) attributes {dimension_semantics = [#tpu.dimension_semantics<parallel>], iteration_bounds = array<i64: 1>, scalar_prefetch = 0 : i64, scratch_operands = 0 : i64, tpu.core_type = #tpu.core_type<tc>, window_params = [{transform_indices = @transform_0, window_bounds = array<i64: 8, 10>}, {pipeline_mode = #tpu.pipeline_mode<synchronous>, transform_indices = @transform_1, window_bounds = array<i64: 10, 32>}, {pipeline_mode = #tpu.pipeline_mode<synchronous>, transform_indices = @transform_2, window_bounds = array<i64: 1, 32>}, {pipeline_mode = #tpu.pipeline_mode<synchronous>, transform_indices = @transform_3, window_bounds = array<i64: 32, 32>}, {pipeline_mode = #tpu.pipeline_mode<synchronous>, transform_indices = @transform_4, window_bounds = array<i64: 1, 32>}, {pipeline_mode = #tpu.pipeline_mode<synchronous>, transform_indices = @transform_5, window_bounds = array<i64: 32, 8>}, {pipeline_mode = #tpu.pipeline_mode<synchronous>, transform_indices = @transform_6, window_bounds = array<i64: 1, 8>}, {transform_indices = @transform_7, window_bounds = array<i64: 8, 8>}]} {
    %c0 = arith.constant 0 : index
    %c0_0 = arith.constant 0 : index
    %0 = vector.load %arg1[%c0, %c0_0] : memref<8x10xf32, #tpu.memory_space<vmem>>, vector<8x10xf32>
    %c0_1 = arith.constant 0 : index
    %c0_2 = arith.constant 0 : index
    %1 = vector.load %arg2[%c0_1, %c0_2] : memref<10x32xf32, #tpu.memory_space<vmem>>, vector<10x32xf32>
    %cst = arith.constant dense<0.000000e+00> : vector<8x32xf32>
    %2 = tpu.matmul %0, %1, %cst {dimension_numbers = #tpu.dot_dimension_numbers<[1], [0], [0], [1], [0, 0, 1, 1], [], []>} : vector<8x10xf32>, vector<10x32xf32>, vector<8x32xf32> -> vector<8x32xf32>
    %c0_3 = arith.constant 0 : index
    %c0_4 = arith.constant 0 : index
    %3 = vector.load %arg3[%c0_3, %c0_4] : memref<1x32xf32, #tpu.memory_space<vmem>>, vector<1x32xf32>
    %4 = vector.broadcast %3 : vector<1x32xf32> to vector<8x32xf32>
    %5 = arith.addf %2, %4 : vector<8x32xf32>
    %cst_5 = arith.constant 0.000000e+00 : f32
    %6 = vector.broadcast %cst_5 : f32 to vector<8x32xf32>
    %7 = arith.maximumf %5, %6 : vector<8x32xf32>
    %c0_6 = arith.constant 0 : index
    %c0_7 = arith.constant 0 : index
    %8 = vector.load %arg4[%c0_6, %c0_7] : memref<32x32xf32, #tpu.memory_space<vmem>>, vector<32x32xf32>
    %cst_8 = arith.constant dense<0.000000e+00> : vector<8x32xf32>
    %9 = tpu.matmul %7, %8, %cst_8 {dimension_numbers = #tpu.dot_dimension_numbers<[1], [0], [0], [1], [0, 0, 1, 1], [], []>} : vector<8x32xf32>, vector<32x32xf32>, vector<8x32xf32> -> vector<8x32xf32>
    %c0_9 = arith.constant 0 : index
    %c0_10 = arith.constant 0 : index
    %10 = vector.load %arg5[%c0_9, %c0_10] : memref<1x32xf32, #tpu.memory_space<vmem>>, vector<1x32xf32>
    %11 = vector.broadcast %10 : vector<1x32xf32> to vector<8x32xf32>
    %12 = arith.addf %9, %11 : vector<8x32xf32>
    %cst_11 = arith.constant 0.000000e+00 : f32
    %13 = vector.broadcast %cst_11 : f32 to vector<8x32xf32>
    %14 = arith.maximumf %12, %13 : vector<8x32xf32>
    %c0_12 = arith.constant 0 : index
    %c0_13 = arith.constant 0 : index
    %15 = vector.load %arg6[%c0_12, %c0_13] : memref<32x8xf32, #tpu.memory_space<vmem>>, vector<32x8xf32>
    %cst_14 = arith.constant dense<0.000000e+00> : vector<8x8xf32>
    %16 = tpu.matmul %14, %15, %cst_14 {dimension_numbers = #tpu.dot_dimension_numbers<[1], [0], [0], [1], [0, 0, 1, 1], [], []>} : vector<8x32xf32>, vector<32x8xf32>, vector<8x8xf32> -> vector<8x8xf32>
    %c0_15 = arith.constant 0 : index
    %c0_16 = arith.constant 0 : index
    %17 = vector.load %arg7[%c0_15, %c0_16] : memref<1x8xf32, #tpu.memory_space<vmem>>, vector<1x8xf32>
    %18 = vector.broadcast %17 : vector<1x8xf32> to vector<8x8xf32>
    %19 = arith.addf %16, %18 : vector<8x8xf32>
    %cst_17 = arith.constant dense<0xFF800000> : vector<8xf32>
    %20 = vector.multi_reduction <maximumf>, %19, %cst_17 [1] : vector<8x8xf32> to vector<8xf32>
    %21 = vector.shape_cast %20 : vector<8xf32> to vector<8x1xf32>
    %22 = vector.broadcast %21 : vector<8x1xf32> to vector<8x8xf32>
    %23 = arith.subf %19, %22 : vector<8x8xf32>
    %24 = math.exp %23 : vector<8x8xf32>
    %cst_18 = arith.constant dense<0.000000e+00> : vector<8xf32>
    %25 = vector.multi_reduction <add>, %24, %cst_18 [1] : vector<8x8xf32> to vector<8xf32>
    %26 = vector.shape_cast %25 : vector<8xf32> to vector<8x1xf32>
    %27 = tpu.reciprocal %26 : vector<8x1xf32> -> vector<8x1xf32>
    %28 = vector.broadcast %27 : vector<8x1xf32> to vector<8x8xf32>
    %29 = arith.mulf %24, %28 : vector<8x8xf32>
    %c0_19 = arith.constant 0 : index
    %c0_20 = arith.constant 0 : index
    %30 = vector.load %arg8[%c0_19, %c0_20] : memref<8x8xf32, #tpu.memory_space<vmem>>, vector<8x8xf32>
    tpu.vector_store %arg8[%c0_19, %c0_20], %29 {strides = array<i32>} : memref<8x8xf32, #tpu.memory_space<vmem>>, vector<8x8xf32>,
    return
  }
  func.func @transform_0(%arg0: i32) -> (i32, i32) {
    %c0_i32 = arith.constant 0 : i32
    %c0_i32_0 = arith.constant 0 : i32
    return %arg0, %c0_i32 : i32, i32
  }
  func.func @transform_1(%arg0: i32) -> (i32, i32) {
    %c0_i32 = arith.constant 0 : i32
    %c0_i32_0 = arith.constant 0 : i32
    %c0_i32_1 = arith.constant 0 : i32
    return %c0_i32, %c0_i32_0 : i32, i32
  }
  func.func @transform_2(%arg0: i32) -> (i32, i32) {
    %c0_i32 = arith.constant 0 : i32
    %c0_i32_0 = arith.constant 0 : i32
    %c0_i32_1 = arith.constant 0 : i32
    return %c0_i32, %c0_i32_0 : i32, i32
  }
  func.func @transform_3(%arg0: i32) -> (i32, i32) {
    %c0_i32 = arith.constant 0 : i32
    %c0_i32_0 = arith.constant 0 : i32
    %c0_i32_1 = arith.constant 0 : i32
    return %c0_i32, %c0_i32_0 : i32, i32
  }
  func.func @transform_4(%arg0: i32) -> (i32, i32) {
    %c0_i32 = arith.constant 0 : i32
    %c0_i32_0 = arith.constant 0 : i32
    %c0_i32_1 = arith.constant 0 : i32
    return %c0_i32, %c0_i32_0 : i32, i32
  }
  func.func @transform_5(%arg0: i32) -> (i32, i32) {
    %c0_i32 = arith.constant 0 : i32
    %c0_i32_0 = arith.constant 0 : i32
    %c0_i32_1 = arith.constant 0 : i32
    return %c0_i32, %c0_i32_0 : i32, i32
  }
  func.func @transform_6(%arg0: i32) -> (i32, i32) {
    %c0_i32 = arith.constant 0 : i32
    %c0_i32_0 = arith.constant 0 : i32
    %c0_i32_1 = arith.constant 0 : i32
    return %c0_i32, %c0_i32_0 : i32, i32
  }
  func.func @transform_7(%arg0: i32) -> (i32, i32) {
    %c0_i32 = arith.constant 0 : i32
    %c0_i32_0 = arith.constant 0 : i32
    return %arg0, %c0_i32 : i32, i32
  }
}

</mosaic_0001>

<llo_original>
// kernel: mode_selector_forward.1
$region0: #{mode_selector_forward.1}
  #allocation0 [shape = 'u32[]', space=smem, size = 0x4, offset = 0x4, fixed_abs, tag = 'smem constant byte address 0x4 - core index']
  #allocation1 [shape = 'u32[144,128]{1,0:T(1,128)}', space=vmem, size = 0x12000, scoped, tag = 'internal scratch']
  %s0 = inlined_call_operand.hbm [shape: f32[8,10], index: 0, kind: input, shape index: {}]
  %s1 = inlined_call_operand.vmem [shape: f32[10,32], index: 1, kind: input, shape index: {}]
  %s2 = inlined_call_operand.vmem [shape: f32[1,32], index: 2, kind: input, shape index: {}]
  %s3 = inlined_call_operand.vmem [shape: f32[32,32], index: 3, kind: input, shape index: {}]
  %s4 = inlined_call_operand.vmem [shape: f32[1,32], index: 4, kind: input, shape index: {}]
  %s5 = inlined_call_operand.vmem [shape: f32[32,8], index: 5, kind: input, shape index: {}]
  %s6 = inlined_call_operand.vmem [shape: f32[1,8], index: 6, kind: input, shape index: {}]
  %s7 = inlined_call_operand.hbm [shape: f32[8,8], index: 7, kind: output, shape index: {}]
  %s8 = sld [smem:[#allocation0]]
  $region42: #{mode_selector_forward.1} parent=0
    _
  %s10 = ssub.s32 1, %s8
  %s11 = scalar_select 0, %s10, %s8
  $region1: #{mode_selector_forward.1} parent=0
    #allocation2 [shape = 'u8[4096]{0}', space=vmem, size = 0x1000, scoped, tag = 'input window, operand 0, single buffered']
    #allocation3 [shape = 's32[1]{0}', space=sflag, size = 0x4, scoped, tag = 'scoped memory for mode_selector_forward.1']
    #allocation4 [shape = 's32[1]{0}', space=sflag, size = 0x4, scoped, tag = 'scoped memory for mode_selector_forward.1']
    #allocation5 [shape = 'u8[4096]{0}', space=vmem, size = 0x1000, scoped, tag = 'output window, operand 0, single buffered']
    %12 = vsyncpa [#allocation3], 0
    %13 = vsyncpa [#allocation4], 0
    // Predicated region
    $region2: #{mode_selector_forward.1} parent=1 // pred_check
      _
    $region3: #{mode_selector_forward.1} parent=1 // pred_check_branch
      %15 = sbr.rel (0) target = $region5
    $region4: #{mode_selector_forward.1} parent=1 // pred_region
      %s17 = ssub.s32 128, 128
      %18 = vsyncadd [#allocation3], %s17
      %s20 = sshll.u32 [#allocation2], 4
      %s21 = int_to_ptr.vmem [resolvable:$true] %s20
      %23 = dma.hbm_to_vmem [thread:$0]  %s0, 128, %s21, [#allocation3]
    $region5: #{mode_selector_forward.1} parent=1 // pred_fallthru
      _
    // Predicated region
    $region6: #{mode_selector_forward.1} parent=1 // pred_check
      _
    $region7: #{mode_selector_forward.1} parent=1 // pred_check_branch
      %25 = sbr.rel (0) target = $region9
    $region8: #{mode_selector_forward.1} parent=1 // pred_region
      _
    $region9: #{mode_selector_forward.1} parent=1 // pred_fallthru
      _
    // Predicated region
    $region10: #{mode_selector_forward.1} parent=1 // pred_check
      _
    $region11: #{mode_selector_forward.1} parent=1 // pred_check_branch
      %27 = sbr.rel (0) target = $region13
    $region12: #{mode_selector_forward.1} parent=1 // pred_region
      _
    $region13: #{mode_selector_forward.1} parent=1 // pred_fallthru
      _
    // Predicated region
    $region14: #{mode_selector_forward.1} parent=1 // pred_check
      _
    $region15: #{mode_selector_forward.1} parent=1 // pred_check_branch
      %29 = sbr.rel (0) target = $region17
    $region16: #{mode_selector_forward.1} parent=1 // pred_region
      _
    $region17: #{mode_selector_forward.1} parent=1 // pred_fallthru
      _
    // Predicated region
    $region18: #{mode_selector_forward.1} parent=1 // pred_check
      _
    $region19: #{mode_selector_forward.1} parent=1 // pred_check_branch
      %31 = sbr.rel (0) target = $region21
    $region20: #{mode_selector_forward.1} parent=1 // pred_region
      _
    $region21: #{mode_selector_forward.1} parent=1 // pred_fallthru
      _
    // Predicated region
    $region22: #{mode_selector_forward.1} parent=1 // pred_check
      _
    $region23: #{mode_selector_forward.1} parent=1 // pred_check_branch
      %33 = sbr.rel (0) target = $region25
    $region24: #{mode_selector_forward.1} parent=1 // pred_region
      _
    $region25: #{mode_selector_forward.1} parent=1 // pred_fallthru
      _
    // Predicated region
    $region26: #{mode_selector_forward.1} parent=1 // pred_check
      _
    $region27: #{mode_selector_forward.1} parent=1 // pred_check_branch
      %35 = sbr.rel (0) target = $region29
    $region28: #{mode_selector_forward.1} parent=1 // pred_region
      _
    $region29: #{mode_selector_forward.1} parent=1 // pred_fallthru
      _
    // Predicated region
    $region30: #{mode_selector_forward.1} parent=1 // pred_check
      _
    $region31: #{mode_selector_forward.1} parent=1 // pred_check_branch
      %37 = sbr.rel (0) target = $region33
    $region32: #{mode_selector_forward.1} parent=1 // pred_region
      %38 = dma.done [#allocation3], 128
    $region33: #{mode_selector_forward.1} parent=1 // pred_fallthru
      _
    %v39 = vld [vmem:[#allocation2] sm:$0xff]
    %v40 = vld [vmem:[%s1] sm:$0xff]
    %v41 = vld [vmem:[%s1 + $0x8] sm:$0x3]
    %v42 = vld [vmem:[%s2] sm:$0x1]
    %v44 = vlaneseq
    %v45 = vshrl.u32 %v44, 7
    %v46 = vsub.s32 0, %v45
    %v47 = vrot.slane %v42, %v46
    %vm49 = vcmask 80896
    %v51 = vsel %vm49, %v39, 0
    %vm53 = vcmask 1041408
    %v55 = vsel %vm53, %v41, 0
    %57 = vmatprep.subr.mxu0 0.0
    %58 = vmatpush1.msra.mxu0 %v40
    %59 = vmatprep.subr.mxu0 0.0
    %60 = vmatpush1.msra.mxu0 %v55
    %61 = vmatprep.subr.mxu0 0.0
    %62 = vmatpush1.msra.mxu0 0.0
    %63 = vmatprep.subr.mxu0 0.0
    %64 = vmatpush1.msra.mxu0 0.0
    %65 = vmatprep.subr.mxu0 0.0
    %66 = vmatpush1.msra.mxu0 0.0
    %67 = vmatprep.subr.mxu0 0.0
    %68 = vmatpush1.msra.mxu0 0.0
    %69 = vmatprep.subr.mxu0 0.0
    %70 = vmatpush1.msra.mxu0 0.0
    %71 = vmatprep.subr.mxu0 0.0
    %72 = vmatpush1.msra.mxu0 0.0
    %73 = vmatprep.subr.mxu0 0.0
    %74 = vmatpush1.msra.mxu0 0.0
    %75 = vmatprep.subr.mxu0 0.0
    %76 = vmatpush1.msra.mxu0 0.0
    %77 = vmatprep.subr.mxu0 0.0
    %78 = vmatpush1.msra.mxu0 0.0
    %79 = vmatprep.subr.mxu0 0.0
    %80 = vmatpush1.msra.mxu0 0.0
    %81 = vmatprep.subr.mxu0 0.0
    %82 = vmatpush1.msra.mxu0 0.0
    %83 = vmatprep.subr.mxu0 0.0
    %84 = vmatpush1.msra.mxu0 0.0
    %85 = vmatprep.subr.mxu0 0.0
    %86 = vmatpush1.msra.mxu0 0.0
    %87 = vmatprep.subr.mxu0 0.0
    %88 = vmatpush1.msra.mxu0 0.0
    %89 = vmatprep.subr.mxu0 0.0
    %90 = vmatpush1.msra.mxu0 0.0
    %91 = vmatprep.subr.mxu0 0.0
    %92 = vmatpush1.msra.mxu0 0.0
    %93 = vmatprep.subr.mxu0 0.0
    %94 = vmatpush1.msra.mxu0 0.0
    %95 = vmatprep.subr.mxu0 0.0
    %96 = vmatpush1.msra.mxu0 0.0
    %97 = vmatprep.subr.mxu0 0.0
    %98 = vmatpush1.msra.mxu0 0.0
    %99 = vmatprep.subr.mxu0 0.0
    %100 = vmatpush1.msra.mxu0 0.0
    %101 = vmatprep.subr.mxu0 0.0
    %102 = vmatpush1.msra.mxu0 0.0
    %103 = vmatprep.subr.mxu0 0.0
    %104 = vmatpush1.msra.mxu0 0.0
    %105 = vmatprep.subr.mxu0 0.0
    %106 = vmatpush1.msra.mxu0 0.0
    %107 = vmatprep.subr.mxu0 0.0
    %108 = vmatpush1.msra.mxu0 0.0
    %109 = vmatprep.subr.mxu0 0.0
    %110 = vmatpush1.msra.mxu0 0.0
    %111 = vmatprep.subr.mxu0 0.0
    %112 = vmatpush1.msra.mxu0 0.0
    %113 = vmatprep.subr.mxu0 0.0
    %114 = vmatpush1.msra.mxu0 0.0
    %115 = vmatprep.subr.mxu0 0.0
    %116 = vmatpush1.msra.mxu0 0.0
    %117 = vmatprep.subr.mxu0 0.0
    %118 = vmatpush1.msra.mxu0 0.0
    %119 = vmatprep.subr.mxu0 0.0
    %120 = vmatpush1.msra.mxu0 0.0
    %121 = vmatprep.mubr.f32.mxu0 0.0
    %122 = vmatmul.mubr.f32.gmra.mrb[0].mxu0 %v51
    %v123 = vpop.f32.mrb[0].mxu0
    %v124 = vadd.f32 %v47, %v123
    %v125 = vpop.f32.mrb[0].mxu0
    %126 = vdwg.mxu0
    %v127 = vmax.f32 %v124, 0.0
    %v128 = vld [vmem:[%s3] sm:$0xff]
    %v129 = vld [vmem:[%s3 + $0x8] sm:$0xff]
    %v130 = vld [vmem:[%s3 + $0x10] sm:$0xff]
    %v131 = vld [vmem:[%s3 + $0x18] sm:$0xff]
    %v132 = vld [vmem:[%s4] sm:$0x1]
    %v134 = vlaneseq
    %v135 = vshrl.u32 %v134, 7
    %v136 = vsub.s32 0, %v135
    %v137 = vrot.slane %v132, %v136
    %vm139 = vcmask 261120
    %v141 = vsel %vm139, %v127, 0
    %143 = vmatprep.subr.mxu0 0.0
    %144 = vmatpush1.msra.mxu0 %v128
    %145 = vmatprep.subr.mxu0 0.0
    %146 = vmatpush1.msra.mxu0 %v129
    %147 = vmatprep.subr.mxu0 0.0
    %148 = vmatpush1.msra.mxu0 %v130
    %149 = vmatprep.subr.mxu0 0.0
    %150 = vmatpush1.msra.mxu0 %v131
    %151 = vmatprep.subr.mxu0 0.0
    %152 = vmatpush1.msra.mxu0 0.0
    %153 = vmatprep.subr.mxu0 0.0
    %154 = vmatpush1.msra.mxu0 0.0
    %155 = vmatprep.subr.mxu0 0.0
    %156 = vmatpush1.msra.mxu0 0.0
    %157 = vmatprep.subr.mxu0 0.0
    %158 = vmatpush1.msra.mxu0 0.0
    %159 = vmatprep.subr.mxu0 0.0
    %160 = vmatpush1.msra.mxu0 0.0
    %161 = vmatprep.subr.mxu0 0.0
    %162 = vmatpush1.msra.mxu0 0.0
    %163 = vmatprep.subr.mxu0 0.0
    %164 = vmatpush1.msra.mxu0 0.0
    %165 = vmatprep.subr.mxu0 0.0
    %166 = vmatpush1.msra.mxu0 0.0
    %167 = vmatprep.subr.mxu0 0.0
    %168 = vmatpush1.msra.mxu0 0.0
    %169 = vmatprep.subr.mxu0 0.0
    %170 = vmatpush1.msra.mxu0 0.0
    %171 = vmatprep.subr.mxu0 0.0
    %172 = vmatpush1.msra.mxu0 0.0
    %173 = vmatprep.subr.mxu0 0.0
    %174 = vmatpush1.msra.mxu0 0.0
    %175 = vmatprep.subr.mxu0 0.0
    %176 = vmatpush1.msra.mxu0 0.0
    %177 = vmatprep.subr.mxu0 0.0
    %178 = vmatpush1.msra.mxu0 0.0
    %179 = vmatprep.subr.mxu0 0.0
    %180 = vmatpush1.msra.mxu0 0.0
    %181 = vmatprep.subr.mxu0 0.0
    %182 = vmatpush1.msra.mxu0 0.0
    %183 = vmatprep.subr.mxu0 0.0
    %184 = vmatpush1.msra.mxu0 0.0
    %185 = vmatprep.subr.mxu0 0.0
    %186 = vmatpush1.msra.mxu0 0.0
    %187 = vmatprep.subr.mxu0 0.0
    %188 = vmatpush1.msra.mxu0 0.0
    %189 = vmatprep.subr.mxu0 0.0
    %190 = vmatpush1.msra.mxu0 0.0
    %191 = vmatprep.subr.mxu0 0.0
    %192 = vmatpush1.msra.mxu0 0.0
    %193 = vmatprep.subr.mxu0 0.0
    %194 = vmatpush1.msra.mxu0 0.0
    %195 = vmatprep.subr.mxu0 0.0
    %196 = vmatpush1.msra.mxu0 0.0
    %197 = vmatprep.subr.mxu0 0.0
    %198 = vmatpush1.msra.mxu0 0.0
    %199 = vmatprep.subr.mxu0 0.0
    %200 = vmatpush1.msra.mxu0 0.0
    %201 = vmatprep.subr.mxu0 0.0
    %202 = vmatpush1.msra.mxu0 0.0
    %203 = vmatprep.subr.mxu0 0.0
    %204 = vmatpush1.msra.mxu0 0.0
    %205 = vmatprep.subr.mxu0 0.0
    %206 = vmatpush1.msra.mxu0 0.0
    %207 = vmatprep.mubr.f32.mxu0 0.0
    %208 = vmatmul.mubr.f32.gmra.mrb[0].mxu0 %v141
    %v209 = vpop.f32.mrb[0].mxu0
    %v210 = vadd.f32 %v137, %v209
    %v211 = vpop.f32.mrb[0].mxu0
    %212 = vdwg.mxu0
    %v213 = vmax.f32 %v210, 0.0
    %v214 = vld [vmem:[%s5] sm:$0xff]
    %v215 = vld [vmem:[%s5 + $0x8] sm:$0xff]
    %v216 = vld [vmem:[%s5 + $0x10] sm:$0xff]
    %v217 = vld [vmem:[%s5 + $0x18] sm:$0xff]
    %v218 = vld [vmem:[%s6] sm:$0x1]
    %v220 = vlaneseq
    %v221 = vshrl.u32 %v220, 7
    %v222 = vsub.s32 0, %v221
    %v223 = vrot.slane %v218, %v222
    %v226 = vsel %vm139, %v213, 0
    %228 = vmatprep.subr.mxu0 0.0
    %229 = vmatpush1.msra.mxu0 %v214
    %230 = vmatprep.subr.mxu0 0.0
    %231 = vmatpush1.msra.mxu0 %v215
    %232 = vmatprep.subr.mxu0 0.0
    %233 = vmatpush1.msra.mxu0 %v216
    %234 = vmatprep.subr.mxu0 0.0
    %235 = vmatpush1.msra.mxu0 %v217
    %236 = vmatprep.subr.mxu0 0.0
    %237 = vmatpush1.msra.mxu0 0.0
    %238 = vmatprep.subr.mxu0 0.0
    %239 = vmatpush1.msra.mxu0 0.0
    %240 = vmatprep.subr.mxu0 0.0
    %241 = vmatpush1.msra.mxu0 0.0
    %242 = vmatprep.subr.mxu0 0.0
    %243 = vmatpush1.msra.mxu0 0.0
    %244 = vmatprep.subr.mxu0 0.0
    %245 = vmatpush1.msra.mxu0 0.0
    %246 = vmatprep.subr.mxu0 0.0
    %247 = vmatpush1.msra.mxu0 0.0
    %248 = vmatprep.subr.mxu0 0.0
    %249 = vmatpush1.msra.mxu0 0.0
    %250 = vmatprep.subr.mxu0 0.0
    %251 = vmatpush1.msra.mxu0 0.0
    %252 = vmatprep.subr.mxu0 0.0
    %253 = vmatpush1.msra.mxu0 0.0
    %254 = vmatprep.subr.mxu0 0.0
    %255 = vmatpush1.msra.mxu0 0.0
    %256 = vmatprep.subr.mxu0 0.0
    %257 = vmatpush1.msra.mxu0 0.0
    %258 = vmatprep.subr.mxu0 0.0
    %259 = vmatpush1.msra.mxu0 0.0
    %260 = vmatprep.subr.mxu0 0.0
    %261 = vmatpush1.msra.mxu0 0.0
    %262 = vmatprep.subr.mxu0 0.0
    %263 = vmatpush1.msra.mxu0 0.0
    %264 = vmatprep.subr.mxu0 0.0
    %265 = vmatpush1.msra.mxu0 0.0
    %266 = vmatprep.subr.mxu0 0.0
    %267 = vmatpush1.msra.mxu0 0.0
    %268 = vmatprep.subr.mxu0 0.0
    %269 = vmatpush1.msra.mxu0 0.0
    %270 = vmatprep.subr.mxu0 0.0
    %271 = vmatpush1.msra.mxu0 0.0
    %272 = vmatprep.subr.mxu0 0.0
    %273 = vmatpush1.msra.mxu0 0.0
    %274 = vmatprep.subr.mxu0 0.0
    %275 = vmatpush1.msra.mxu0 0.0
    %276 = vmatprep.subr.mxu0 0.0
    %277 = vmatpush1.msra.mxu0 0.0
    %278 = vmatprep.subr.mxu0 0.0
    %279 = vmatpush1.msra.mxu0 0.0
    %280 = vmatprep.subr.mxu0 0.0
    %281 = vmatpush1.msra.mxu0 0.0
    %282 = vmatprep.subr.mxu0 0.0
    %283 = vmatpush1.msra.mxu0 0.0
    %284 = vmatprep.subr.mxu0 0.0
    %285 = vmatpush1.msra.mxu0 0.0
    %286 = vmatprep.subr.mxu0 0.0
    %287 = vmatpush1.msra.mxu0 0.0
    %288 = vmatprep.subr.mxu0 0.0
    %289 = vmatpush1.msra.mxu0 0.0
    %290 = vmatprep.subr.mxu0 0.0
    %291 = vmatpush1.msra.mxu0 0.0
    %292 = vmatprep.mubr.f32.mxu0 0.0
    %293 = vmatmul.mubr.f32.gmra.mrb[0].mxu0 %v226
    %v294 = vpop.f32.mrb[0].mxu0
    %v295 = vadd.f32 %v223, %v294
    %v296 = vpop.f32.mrb[0].mxu0
    %297 = vdwg.mxu0
    %vm298 = vcmask 64512
    %v299 = vsel %vm298, %v295, -inf
    %300 = vmax.xlane.f32.xlu0 %v299
    %v301 = vpop.xlane.xlu0 %300
    %v302 = vsub.f32 %v295, %v301
    %v303 = vmul.f32 %v302, 1.442695
    %v304 = vpow.pop %v303
    %v305 = vsel %vm298, %v304, 0.0
    %306 = vadd.xlane.f32.xlu0 %v305
    %v307 = vpop.xlane.xlu0 %306
    %v308 = vrcp.pop %v307
    %v309 = vmul.f32 %v304, %v308
    %310 = vst.msk [vmem:[#allocation5] sm:$0xff] %vm298, %v309
    // Predicated region
    $region34: #{mode_selector_forward.1} parent=1 // pred_check
      _
    $region35: #{mode_selector_forward.1} parent=1 // pred_check_branch
      %312 = sbr.rel (0) target = $region37
    $region36: #{mode_selector_forward.1} parent=1 // pred_region
      %s314 = ssub.s32 128, 128
      %315 = vsyncadd [#allocation4], %s314
      %s317 = sshll.u32 [#allocation5], 4
      %s318 = int_to_ptr.vmem [resolvable:$true] %s317
      %320 = dma.vmem_to_hbm [thread:$0]  %s318, 128, %s7, [#allocation4]
    $region37: #{mode_selector_forward.1} parent=1 // pred_fallthru
      _
    // Predicated region
    $region38: #{mode_selector_forward.1} parent=1 // pred_check
      _
    $region39: #{mode_selector_forward.1} parent=1 // pred_check_branch
      %322 = sbr.rel (0) target = $region41
    $region40: #{mode_selector_forward.1} parent=1 // pred_region
      %323 = dma.done [#allocation4], 128
    $region41: #{mode_selector_forward.1} parent=1 // pred_fallthru
      _
    %324 = vsyncpa [#allocation3], 1
    %325 = vsyncpa [#allocation4], 1

</llo_original>
